<compile_context>
chip_gen: v5e
topology: v5e:2x2
jax: 0.10.0
libtpu: 0.0.40
codegen_flags: <defaults>
</compile_context>

<pallas_src>
import jax
import jax.numpy as jnp
from jax.experimental import pallas as pl
from jax.experimental.pallas import tpu as pltpu


def stack_context_kernel(y_ref, w1_ref, b1_ref, w2row_ref, b2_ref, out_ref):
    """One batch tile: Linear -> ReLU -> column-0 of Linear2, plus theta copy."""
    yt = y_ref[...]                                            # (TB, T+1) f32

    # Layer 1 on the MXU.  w1_ref is (T+1, H) with a zero last row, so the
    # theta column of y contributes exactly 0 to the hidden activations.
    h = jnp.dot(yt, w1_ref[...], preferred_element_type=jnp.float32) + b1_ref[...]
    h = jnp.maximum(h, 0.0)                                    # (TB, H)

    # Layer 2, kept column only: elementwise mul (VPU) + lane reduce (XLU),
    # plus the scalar bias of that column.  w2row_ref is (1, H) == w2[:, :1].T.
    emb = jnp.sum(h * w2row_ref[...], axis=-1, keepdims=True) + b2_ref[...]  # (TB, 1)

    # Exact f32 pass-through of theta; single (TB, 2) store.
    theta = yt[:, -1:]                                         # (TB, 1)
    out_ref[...] = jnp.concatenate([emb, theta], axis=1)       # (TB, 2)


def _pick_tb(B: int, tb_max: int) -> int:
    """Batch-tile size: multiple of 8 (sublane), large enough to amortize the
    ~0.35 us per-grid-step overhead, but >= 2 grid steps when possible so
    v7x's two TensorCores both get work."""
    if B < 16:
        return B                                  # single full-extent tile
    tb = min((tb_max // 8) * 8, ((B + 7) // 8) * 8)
    if pl.cdiv(B, tb) < 2:
        tb = ((B + 15) // 16) * 8                 # ~ceil(B/2), sublane-aligned
    return max(tb, 8)


def stack_context(y, w1, b1, w2, b2, *, tb_max=4096):
    """StackContext forward.  y: (B, T+1) -> (B, 2)."""
    B, Tp1 = y.shape
    H = w1.shape[1]

    # Tiny host-side weight prep (weights only; y is fed to the kernel as-is).
    w1_pad = jnp.concatenate([w1, jnp.zeros((1, H), w1.dtype)], axis=0)  # (T+1, H)
    w2_row = w2[:, :1].T                                                 # (1, H)
    b2_col = b2[:, :1]                                                   # (1, 1)

    TB = _pick_tb(B, tb_max)
    grid = (pl.cdiv(B, TB),)

    return pl.pallas_call(
        stack_context_kernel,
        out_shape=jax.ShapeDtypeStruct((B, 2), jnp.float32),
        grid=grid,
        in_specs=[
            pl.BlockSpec((TB, Tp1), lambda i: (i, 0)),   # y: tiled over batch
            pl.BlockSpec((Tp1, H), lambda i: (0, 0)),    # w1 (zero-padded row): resident
            pl.BlockSpec((1, H), lambda i: (0, 0)),      # b1: resident
            pl.BlockSpec((1, H), lambda i: (0, 0)),      # w2 kept column: resident
            pl.BlockSpec((1, 1), lambda i: (0, 0)),      # b2 kept scalar: resident
        ],
        out_specs=pl.BlockSpec((TB, 2), lambda i: (i, 0)),
        compiler_params=pltpu.CompilerParams(
            dimension_semantics=("parallel",),           # shard batch on v7x dual-TC
        ),
    )(y, w1_pad, b1, w2_row, b2_col)


def reference(y, w1, b1, w2, b2):
    x = y[:, :-1]
    theta = y[:, -1:]
    h = jnp.maximum(x @ w1 + b1, 0.0)
    e = h @ w2 + b2
    return jnp.concatenate([e[:, :1], theta], axis=1)


if __name__ == "__main__":
    # small shapes consistent with the forward: y is (n_batch, n_times + 1)
    n_batch, n_times, n_hidden, n_embed = 8, 16, 32, 8

    key = jax.random.PRNGKey(0)
    k_y, k_w1, k_b1, k_w2, k_b2 = jax.random.split(key, 5)

    y = jax.random.normal(k_y, (n_batch, n_times + 1), dtype=jnp.float32)

    # deterministic embedding-net parameters
    w1 = jax.random.normal(k_w1, (n_times, n_hidden), dtype=jnp.float32) * 0.1
    b1 = jax.random.normal(k_b1, (1, n_hidden), dtype=jnp.float32) * 0.1
    w2 = jax.random.normal(k_w2, (n_hidden, n_embed), dtype=jnp.float32) * 0.1
    b2 = jax.random.normal(k_b2, (1, n_embed), dtype=jnp.float32) * 0.1

    out = jax.block_until_ready(stack_context(y, w1, b1, w2, b2))
    ref = reference(y, w1, b1, w2, b2)

    assert out.shape == (n_batch, 2), out.shape
    assert jnp.allclose(out, ref, atol=1e-5, rtol=1e-5), (out, ref)
    # last column must be an exact pass-through of theta
    assert jnp.array_equal(out[:, 1], y[:, -1]), "theta pass-through mismatch"

    print("KERNEL_OK")
</pallas_src>

<mosaic_0001>
module attributes {stable_mosaic.version = 11 : i64} {
  func.func @stack_context_kernel(%arg0: i32, %arg1: memref<8x17xf32, #tpu.memory_space<vmem>>, %arg2: memref<17x32xf32, #tpu.memory_space<vmem>>, %arg3: memref<1x32xf32, #tpu.memory_space<vmem>>, %arg4: memref<1x32xf32, #tpu.memory_space<vmem>>, %arg5: memref<1x1xf32, #tpu.memory_space<vmem>>, %arg6: memref<8x2xf32, #tpu.memory_space<vmem>>) attributes {dimension_semantics = [#tpu.dimension_semantics<parallel>], iteration_bounds = array<i64: 1>, scalar_prefetch = 0 : i64, scratch_operands = 0 : i64, tpu.core_type = #tpu.core_type<tc>, window_params = [{transform_indices = @transform_0, window_bounds = array<i64: 8, 17>}, {pipeline_mode = #tpu.pipeline_mode<synchronous>, transform_indices = @transform_1, window_bounds = array<i64: 17, 32>}, {pipeline_mode = #tpu.pipeline_mode<synchronous>, transform_indices = @transform_2, window_bounds = array<i64: 1, 32>}, {pipeline_mode = #tpu.pipeline_mode<synchronous>, transform_indices = @transform_3, window_bounds = array<i64: 1, 32>}, {pipeline_mode = #tpu.pipeline_mode<synchronous>, transform_indices = @transform_4, window_bounds = array<i64: 1, 1>}, {transform_indices = @transform_5, window_bounds = array<i64: 8, 2>}]} {
    %c0 = arith.constant 0 : index
    %c0_0 = arith.constant 0 : index
    %0 = vector.load %arg1[%c0, %c0_0] : memref<8x17xf32, #tpu.memory_space<vmem>>, vector<8x17xf32>
    %c0_1 = arith.constant 0 : index
    %c0_2 = arith.constant 0 : index
    %1 = vector.load %arg2[%c0_1, %c0_2] : memref<17x32xf32, #tpu.memory_space<vmem>>, vector<17x32xf32>
    %cst = arith.constant dense<0.000000e+00> : vector<8x32xf32>
    %2 = tpu.matmul %0, %1, %cst {dimension_numbers = #tpu.dot_dimension_numbers<[1], [0], [0], [1], [0, 0, 1, 1], [], []>} : vector<8x17xf32>, vector<17x32xf32>, vector<8x32xf32> -> vector<8x32xf32>
    %c0_3 = arith.constant 0 : index
    %c0_4 = arith.constant 0 : index
    %3 = vector.load %arg3[%c0_3, %c0_4] : memref<1x32xf32, #tpu.memory_space<vmem>>, vector<1x32xf32>
    %4 = vector.broadcast %3 : vector<1x32xf32> to vector<8x32xf32>
    %5 = arith.addf %2, %4 : vector<8x32xf32>
    %cst_5 = arith.constant 0.000000e+00 : f32
    %6 = vector.broadcast %cst_5 : f32 to vector<8x32xf32>
    %7 = arith.maximumf %5, %6 : vector<8x32xf32>
    %c0_6 = arith.constant 0 : index
    %c0_7 = arith.constant 0 : index
    %8 = vector.load %arg4[%c0_6, %c0_7] : memref<1x32xf32, #tpu.memory_space<vmem>>, vector<1x32xf32>
    %9 = vector.broadcast %8 : vector<1x32xf32> to vector<8x32xf32>
    %10 = arith.mulf %7, %9 : vector<8x32xf32>
    %cst_8 = arith.constant dense<0.000000e+00> : vector<8xf32>
    %11 = vector.multi_reduction <add>, %10, %cst_8 [1] : vector<8x32xf32> to vector<8xf32>
    %12 = vector.shape_cast %11 : vector<8xf32> to vector<8x1xf32>
    %c0_9 = arith.constant 0 : index
    %c0_10 = arith.constant 0 : index
    %13 = vector.load %arg5[%c0_9, %c0_10] : memref<1x1xf32, #tpu.memory_space<vmem>>, vector<1x1xf32>
    %14 = vector.broadcast %13 : vector<1x1xf32> to vector<8x1xf32>
    %15 = arith.addf %12, %14 : vector<8x1xf32>
    %16 = vector.extract_strided_slice %0 {offsets = [0, 16], sizes = [8, 1], strides = [1, 1]} : vector<8x17xf32> to vector<8x1xf32>
    %17 = tpu.concatenate %15, %16 in 1 : vector<8x1xf32>, vector<8x1xf32> -> vector<8x2xf32>
    %c0_11 = arith.constant 0 : index
    %c0_12 = arith.constant 0 : index
    %18 = vector.load %arg6[%c0_11, %c0_12] : memref<8x2xf32, #tpu.memory_space<vmem>>, vector<8x2xf32>
    tpu.vector_store %arg6[%c0_11, %c0_12], %17 {strides = array<i32>} : memref<8x2xf32, #tpu.memory_space<vmem>>, vector<8x2xf32>,
    return
  }
  func.func @transform_0(%arg0: i32) -> (i32, i32) {
    %c0_i32 = arith.constant 0 : i32
    %c0_i32_0 = arith.constant 0 : i32
    return %arg0, %c0_i32 : i32, i32
  }
  func.func @transform_1(%arg0: i32) -> (i32, i32) {
    %c0_i32 = arith.constant 0 : i32
    %c0_i32_0 = arith.constant 0 : i32
    %c0_i32_1 = arith.constant 0 : i32
    return %c0_i32, %c0_i32_0 : i32, i32
  }
  func.func @transform_2(%arg0: i32) -> (i32, i32) {
    %c0_i32 = arith.constant 0 : i32
    %c0_i32_0 = arith.constant 0 : i32
    %c0_i32_1 = arith.constant 0 : i32
    return %c0_i32, %c0_i32_0 : i32, i32
  }
  func.func @transform_3(%arg0: i32) -> (i32, i32) {
    %c0_i32 = arith.constant 0 : i32
    %c0_i32_0 = arith.constant 0 : i32
    %c0_i32_1 = arith.constant 0 : i32
    return %c0_i32, %c0_i32_0 : i32, i32
  }
  func.func @transform_4(%arg0: i32) -> (i32, i32) {
    %c0_i32 = arith.constant 0 : i32
    %c0_i32_0 = arith.constant 0 : i32
    %c0_i32_1 = arith.constant 0 : i32
    return %c0_i32, %c0_i32_0 : i32, i32
  }
  func.func @transform_5(%arg0: i32) -> (i32, i32) {
    %c0_i32 = arith.constant 0 : i32
    %c0_i32_0 = arith.constant 0 : i32
    return %arg0, %c0_i32 : i32, i32
  }
}

</mosaic_0001>

<llo_original>
// kernel: tpu_custom_call.1
$region0: #{tpu_custom_call.1}
  #allocation0 [shape = 'u32[]', space=smem, size = 0x4, offset = 0x4, fixed_abs, tag = 'smem constant byte address 0x4 - core index']
  #allocation1 [shape = 'u32[72,128]{1,0:T(1,128)}', space=vmem, size = 0x9000, scoped, tag = 'internal scratch']
  #allocation2 [shape = 'f32[1,1]{1,0:T(1,128)S(1)}', space=vmem, size = 0x200, scoped, tag = 'scoped memory for tpu_custom_call.1']
  %s0 = inlined_call_operand.hbm [shape: f32[8,17], index: 0, kind: input, shape index: {}]
  %s1 = inlined_call_operand.hbm [shape: f32[17,32], index: 1, kind: input, shape index: {}]
  %s2 = inlined_call_operand.vmem [shape: f32[1,32], index: 2, kind: input, shape index: {}]
  %s3 = inlined_call_operand.vmem [shape: f32[1,32], index: 3, kind: input, shape index: {}]
  %s4 = inlined_call_operand.<no memory space> [shape: f32[1,1], index: 4, kind: input, shape index: {}]
  %s5 = inlined_call_operand.vmem [shape: f32[8,2], index: 5, kind: output, shape index: {}]
  %s6 = sld [smem:[#allocation0]]
  $region38: #{tpu_custom_call.1} parent=0
    _
  %s8 = ssub.s32 1, %s6
  %s9 = scalar_select 0, %s8, %s6
  %v10 = vstv %s4
  %11 = vst [vmem:[#allocation2] sm:$0x1] %v10
  $region1: #{tpu_custom_call.1} parent=0
    #allocation3 [shape = 'u8[4096]{0}', space=vmem, size = 0x1000, scoped, tag = 'input window, operand 0, single buffered']
    #allocation4 [shape = 's32[1]{0}', space=sflag, size = 0x4, scoped, tag = 'scoped memory for tpu_custom_call.1']
    #allocation5 [shape = 'u8[12288]{0}', space=vmem, size = 0x3000, scoped, tag = 'input window, operand 1, single buffered']
    #allocation6 [shape = 's32[1]{0}', space=sflag, size = 0x4, scoped, tag = 'scoped memory for tpu_custom_call.1']
    %12 = vsyncpa [#allocation4], 0
    %13 = vsyncpa [#allocation6], 0
    // Predicated region
    $region2: #{tpu_custom_call.1} parent=1 // pred_check
      _
    $region3: #{tpu_custom_call.1} parent=1 // pred_check_branch
      %15 = sbr.rel (0) target = $region5
    $region4: #{tpu_custom_call.1} parent=1 // pred_region
      %17 = vsyncadd [#allocation4], 0
      %s19 = sshll.u32 %s0, 4
      %s20 = int_to_ptr.hbm [resolvable:$true] %s19
      %s21 = sshll.u32 [#allocation3], 4
      %s22 = int_to_ptr.vmem [resolvable:$true] %s21
      %24 = dma.hbm_to_vmem [thread:$0]  %s20, 128, %s22, [#allocation4]
    $region5: #{tpu_custom_call.1} parent=1 // pred_fallthru
      _
    // Predicated region
    $region6: #{tpu_custom_call.1} parent=1 // pred_check
      _
    $region7: #{tpu_custom_call.1} parent=1 // pred_check_branch
      %26 = sbr.rel (0) target = $region9
    $region8: #{tpu_custom_call.1} parent=1 // pred_region
      %28 = vsyncadd [#allocation6], 0
      %s29 = sshll.u32 %s1, 4
      %s30 = int_to_ptr.hbm [resolvable:$true] %s29
      %s31 = sshll.u32 [#allocation5], 4
      %s32 = int_to_ptr.vmem [resolvable:$true] %s31
      %37 = dma.hbm_to_vmem [thread:$0]  %s30, 384, %s32, [#allocation6], 128, 128, 8
    $region9: #{tpu_custom_call.1} parent=1 // pred_fallthru
      _
    // Predicated region
    $region10: #{tpu_custom_call.1} parent=1 // pred_check
      _
    $region11: #{tpu_custom_call.1} parent=1 // pred_check_branch
      %39 = sbr.rel (0) target = $region13
    $region12: #{tpu_custom_call.1} parent=1 // pred_region
      _
    $region13: #{tpu_custom_call.1} parent=1 // pred_fallthru
      _
    // Predicated region
    $region14: #{tpu_custom_call.1} parent=1 // pred_check
      _
    $region15: #{tpu_custom_call.1} parent=1 // pred_check_branch
      %41 = sbr.rel (0) target = $region17
    $region16: #{tpu_custom_call.1} parent=1 // pred_region
      _
    $region17: #{tpu_custom_call.1} parent=1 // pred_fallthru
      _
    // Predicated region
    $region18: #{tpu_custom_call.1} parent=1 // pred_check
      _
    $region19: #{tpu_custom_call.1} parent=1 // pred_check_branch
      %43 = sbr.rel (0) target = $region21
    $region20: #{tpu_custom_call.1} parent=1 // pred_region
      _
    $region21: #{tpu_custom_call.1} parent=1 // pred_fallthru
      _
    // Predicated region
    $region22: #{tpu_custom_call.1} parent=1 // pred_check
      _
    $region23: #{tpu_custom_call.1} parent=1 // pred_check_branch
      %45 = sbr.rel (0) target = $region25
    $region24: #{tpu_custom_call.1} parent=1 // pred_region
      %47 = dma.done [#allocation4], 128
    $region25: #{tpu_custom_call.1} parent=1 // pred_fallthru
      _
    // Predicated region
    $region26: #{tpu_custom_call.1} parent=1 // pred_check
      _
    $region27: #{tpu_custom_call.1} parent=1 // pred_check_branch
      %49 = sbr.rel (0) target = $region29
    $region28: #{tpu_custom_call.1} parent=1 // pred_region
      %51 = dma.done [#allocation6], 384
    $region29: #{tpu_custom_call.1} parent=1 // pred_fallthru
      _
    %v52 = vld [vmem:[#allocation3] sm:$0xff]
    %v53 = vld [vmem:[#allocation5] sm:$0xff]
    %v54 = vld [vmem:[#allocation5 + $0x8] sm:$0xff]
    %v55 = vld [vmem:[#allocation5 + $0x10] sm:$0x1]
    %v56 = vld [vmem:[%s2] sm:$0x1]
    %v58 = vperm.slane %v56, 0
    %vm60 = vcmask 138240
    %v62 = vsel %vm60, %v52, 0
    %vm64 = vcmask 1040384
    %v66 = vsel %vm64, %v55, 0
    %68 = vmatpush.msra.mxu0 0.0
    %69 = vmatpush.msra.mxu0 0.0
    %70 = vmatpush.msra.mxu0 0.0
    %71 = vmatpush.msra.mxu0 0.0
    %72 = vmatpush.msra.mxu0 0.0
    %73 = vmatpush.msra.mxu0 0.0
    %74 = vmatpush.msra.mxu0 0.0
    %75 = vmatpush.msra.mxu0 0.0
    %76 = vmatpush.msra.mxu0 0.0
    %77 = vmatpush.msra.mxu0 0.0
    %78 = vmatpush.msra.mxu0 0.0
    %79 = vmatpush.msra.mxu0 0.0
    %80 = vmatpush.msra.mxu0 0.0
    %81 = vmatpush.msra.mxu0 %v66
    %82 = vmatpush.msra.mxu0 %v54
    %83 = vmatpush.msra.mxu0 %v53
    %84 = vmatmul.f32.gmra.mxu0 %v62
    %v85 = vpop.f32.mrf.mxu0
    %v86 = vadd.f32 %v58, %v85
    %87 = vdwg.mxu0
    %v88 = vmax.f32 %v86, 0.0
    %v89 = vld [vmem:[%s3] sm:$0x1]
    %v91 = vperm.slane %v89, 0
    %v93 = vmul.f32 %v88, %v91
    %vm94 = vcmask 261120
    %v95 = vsel %vm94, %v93, 0.0
    %96 = vadd.xlane.f32.xlu0 %v95
    %v97 = vpop.xlane.xlu0 %96
    %v98 = vld [vmem:[#allocation2] sm:$0x1]
    %v100 = vperm.slane %v98, 0
    %v102 = vadd.f32 %v97, %v100
    %103 = vrot.lane.b32.xlu0 %v52, 113
    %v104 = vpop.permute.xlu0 %103
    %vm106 = vcmask 7168
    %v107 = vsel %vm106, %v102, %v104
    %vm108 = vcmask 15360
    %109 = vst.msk [vmem:[%s5] sm:$0xff] %vm108, %v107
    // Predicated region
    $region30: #{tpu_custom_call.1} parent=1 // pred_check
      _
    $region31: #{tpu_custom_call.1} parent=1 // pred_check_branch
      %111 = sbr.rel (0) target = $region33
    $region32: #{tpu_custom_call.1} parent=1 // pred_region
      _
    $region33: #{tpu_custom_call.1} parent=1 // pred_fallthru
      _
    // Predicated region
    $region34: #{tpu_custom_call.1} parent=1 // pred_check
      _
    $region35: #{tpu_custom_call.1} parent=1 // pred_check_branch
      %113 = sbr.rel (0) target = $region37
    $region36: #{tpu_custom_call.1} parent=1 // pred_region
      _
    $region37: #{tpu_custom_call.1} parent=1 // pred_fallthru
      _
    %114 = vsyncpa [#allocation4], 1
    %115 = vsyncpa [#allocation6], 1

</llo_original>
